<compile_context>
chip_gen: v7x
topology: tpu7x:2x2x1
jax: 0.10.0
libtpu: 0.0.40
codegen_flags: <defaults>
</compile_context>

<pallas_src>
import jax
import jax.numpy as jnp
from jax.experimental import pallas as pl
from jax.experimental.pallas import tpu as pltpu

LANE = 128            # lane width (last dim)
SUB = 16              # bf16 sublane packing (second-to-last dim)
_FASTPATH_MKN = 2 * 1024 * 1024   # below this M*K*N, skip Pallas entirely


def _round_up(x: int, m: int) -> int:
    return (x + m - 1) // m * m


def _pick_tile(dim_pad: int, cap: int, unit: int) -> int:
    """Largest multiple of `unit` that is <= cap and divides dim_pad.

    dim_pad is already a multiple of `unit`, so the result always divides it
    and tiling never forces extra padding.
    """
    best = unit
    t = unit
    top = min(cap, dim_pad)
    while t <= top:
        if dim_pad % t == 0:
            best = t
        t += unit
    return best


# ----------------------------------------------------------------------------
# Pallas kernel: tiled  out = relu(x @ W + b)  with in-place f32 accumulation
# ----------------------------------------------------------------------------
def _linear_relu_kernel(x_ref, w_ref, b_ref, o_ref):
    k = pl.program_id(2)

    @pl.when(k == 0)
    def _():
        o_ref[...] = jnp.zeros_like(o_ref)

    # MXU matmul on bf16 tiles; accumulate in f32 directly into the output
    # block, which stays resident in VMEM across the K ("arbitrary") axis
    # because its index_map ignores k.  No scratch accumulator needed.
    o_ref[...] += jnp.dot(
        x_ref[...], w_ref[...], preferred_element_type=jnp.float32
    )

    @pl.when(k == pl.num_programs(2) - 1)
    def _():
        # Bias + ReLU once per output tile, on the f32 accumulator.
        o_ref[...] = jnp.maximum(o_ref[...] + b_ref[...], 0.0)


@jax.jit
def linear_relu_pallas(x, w, b):
    """out = relu(x @ w[:K, :] + b) via a tiled Pallas TPU kernel.

    x: (M, K) f32/bf16
    w: (Kw, N) — may be pre-padded (Kw >= K, rows K..Kw-1 zero); bf16 preferred
    b: (1, N)  f32
    Returns (M, N) f32.  x is zero-padded up to Kw, which is exact.
    """
    M, K = x.shape
    Kw, N = w.shape
    assert Kw >= K and b.shape == (1, N)

    # ---- small-shape fast path: Pallas launch/padding overhead dominates ----
    if M * Kw * N < _FASTPATH_MKN:
        x_f = x.astype(jnp.bfloat16)
        if Kw != K:
            x_f = jnp.pad(x_f, ((0, 0), (0, Kw - K)))
        out = jnp.dot(x_f, w.astype(jnp.bfloat16),
                      preferred_element_type=jnp.float32)
        return jnp.maximum(out + b.astype(jnp.float32), 0.0)

    # ---- padded (lane/sublane-dense) dims; zero padding is exact ----
    M_pad = _round_up(M, SUB)
    K_pad = _round_up(Kw, LANE)
    N_pad = _round_up(N, LANE)

    # ---- tile selection: divisors of the padded dims, generous caps ----
    tm = _pick_tile(M_pad, 512, SUB)
    tn = _pick_tile(N_pad, 1024, LANE)
    tk = _pick_tile(K_pad, 512, LANE)

    # Megacore: guarantee >= 2 blocks along a "parallel" axis so v7x's second
    # TensorCore is not idle.  Prefer splitting M (never re-pads the weight).
    if M_pad // tm == 1 and N_pad // tn == 1:
        if M_pad >= 2 * SUB:
            tm = _round_up(M_pad // 2, SUB)
            M_pad = _round_up(M_pad, tm)
        elif N_pad >= 2 * LANE:
            tn = _round_up(N_pad // 2, LANE)
            N_pad = _round_up(N_pad, tn)

    # ---- pad operands only when needed (static Python guards; the model's
    #      pre-padded weights/bias hit the no-copy branch every call) ----
    x_bf = x.astype(jnp.bfloat16)
    if x_bf.shape != (M_pad, K_pad):
        x_p = jnp.pad(x_bf, ((0, M_pad - M), (0, K_pad - K)))
    else:
        x_p = x_bf

    w_bf = w.astype(jnp.bfloat16)
    if w_bf.shape != (K_pad, N_pad):
        w_p = jnp.pad(w_bf, ((0, K_pad - Kw), (0, N_pad - N)))
    else:
        w_p = w_bf

    b_f = b.astype(jnp.float32)
    if b_f.shape != (1, N_pad):
        b_p = jnp.pad(b_f, ((0, 0), (0, N_pad - N)))
    else:
        b_p = b_f

    grid = (M_pad // tm, N_pad // tn, K_pad // tk)

    out_p = pl.pallas_call(
        _linear_relu_kernel,
        out_shape=jax.ShapeDtypeStruct((M_pad, N_pad), jnp.float32),
        grid_spec=pltpu.PrefetchScalarGridSpec(
            num_scalar_prefetch=0,
            grid=grid,
            in_specs=[
                pl.BlockSpec((tm, tk), lambda i, j, k: (i, k)),
                pl.BlockSpec((tk, tn), lambda i, j, k: (k, j)),
                pl.BlockSpec((1, tn), lambda i, j, k: (0, j)),  # K-invariant
            ],
            out_specs=pl.BlockSpec((tm, tn), lambda i, j, k: (i, j)),
        ),
        compiler_params=pltpu.CompilerParams(
            dimension_semantics=("parallel", "parallel", "arbitrary"),
            vmem_limit_bytes=32 * 1024 * 1024,
        ),
        cost_estimate=pl.CostEstimate(
            flops=2 * M_pad * K_pad * N_pad,
            transcendentals=0,
            # include operand re-reads across the tiled grid
            bytes_accessed=(
                M_pad * K_pad * 2 * (N_pad // tn)
                + K_pad * N_pad * 2 * (M_pad // tm)
                + M_pad * N_pad * 4
            ),
        ),
    )(x_p, w_p, b_p)

    # Slice back to the caller-visible shape.
    return out_p[:M, :N]


# ----------------------------------------------------------------------------
# Synthetic inner model (deterministic init) + passthrough / wrapper classes
# ----------------------------------------------------------------------------
class SyntheticModel:
    """Stands in for the arbitrary `model` passed to Wrapper.__init__.

    Weights/bias are pre-padded (lane-dense, bf16) once at construction so
    the per-call path never re-pads them.
    """

    def __init__(self, key, d_in: int, d_out: int):
        kw, kb = jax.random.split(key)
        self.d_in = d_in
        self.d_out = d_out
        # Full-precision copies (used only for reference checks).
        self.w = (jax.random.normal(kw, (d_in, d_out), jnp.float32)
                  * (1.0 / jnp.sqrt(d_in)))
        self.b = jax.random.normal(kb, (1, d_out), jnp.float32) * 0.01
        # Pre-padded, bf16 kernel parameters (hoisted out of the call path).
        k_pad = _round_up(d_in, LANE)
        n_pad = _round_up(d_out, LANE)
        self.w_p = jnp.pad(self.w.astype(jnp.bfloat16),
                           ((0, k_pad - d_in), (0, n_pad - d_out)))
        self.b_p = jnp.pad(self.b, ((0, 0), (0, n_pad - d_out)))

    def _linear_relu(self, x):
        out = linear_relu_pallas(x, self.w_p, self.b_p)
        return out[:, :self.d_out]

    # The method that Wrapper.forward dispatches to by name.
    def forward(self, x):
        return self._linear_relu(x)

    # A second dispatchable method, to exercise getattr dispatch.
    def encode(self, x):
        return self._linear_relu(x)


class DataParallelPassthrough:
    """Single-device passthrough analogue of nn.DataParallel.

    # TODO(synk): nn.DataParallel multi-device replication has no clean
    # single-kernel Pallas equivalent; this is a pure passthrough.
    """

    def __init__(self, module):
        self.module = module

    def __getattr__(self, name):
        return getattr(self.module, name)


class Wrapper:
    """JAX analogue of the PyTorch Wrapper module (dynamic method dispatch)."""

    def __init__(self, model):
        self.model = DataParallelPassthrough(model)

    def __call__(self, func_name, *inputs):
        return self.forward(func_name, *inputs)

    def forward(self, func_name, *inputs):
        class_method = getattr(self.model, func_name)
        return class_method(*inputs)


# ----------------------------------------------------------------------------
# Main
# ----------------------------------------------------------------------------
if __name__ == "__main__":
    key = jax.random.PRNGKey(0)
    k_model, k_x, k_xs = jax.random.split(key, 3)

    # Moderate shapes: large enough to take the tiled Pallas path and
    # exercise K padding (200 -> 256) and the megacore M split.
    B, D_IN, D_OUT = 128, 200, 384
    model = SyntheticModel(k_model, D_IN, D_OUT)
    wrapper = Wrapper(model)

    x = jax.random.normal(k_x, (B, D_IN), jnp.float32)

    # Dispatch through the wrapper exactly like the PyTorch module:
    # wrapper("forward", x)  ==  getattr(model, "forward")(x)
    out = jax.block_until_ready(wrapper("forward", x))
    assert out.shape == (B, D_OUT)

    # Reference with the same bf16-input / f32-accumulate numerics.
    ref_bf16 = jnp.maximum(
        jnp.dot(x.astype(jnp.bfloat16), model.w.astype(jnp.bfloat16),
                preferred_element_type=jnp.float32) + model.b,
        0.0,
    )
    assert jnp.allclose(out, ref_bf16, atol=2e-3, rtol=2e-3)

    # Loose check against the full-precision reference as well.
    ref_f32 = jnp.maximum(x @ model.w + model.b, 0.0)
    assert jnp.allclose(out, ref_f32, atol=5e-2, rtol=5e-2)

    # Exercise the second dispatch path too.
    out2 = jax.block_until_ready(wrapper("encode", x))
    assert jnp.allclose(out2, out)

    # Tiny dispatcher-style call exercises the small-shape fast path.
    x_small = jax.random.normal(k_xs, (8, D_IN), jnp.float32)
    out_small = jax.block_until_ready(wrapper("forward", x_small))
    ref_small = jnp.maximum(x_small @ model.w + model.b, 0.0)
    assert out_small.shape == (8, D_OUT)
    assert jnp.allclose(out_small, ref_small, atol=5e-2, rtol=5e-2)

    print("KERNEL_OK")
</pallas_src>

<mosaic_0001>
module attributes {stable_mosaic.version = 11 : i64} {
  func.func @_linear_relu_kernel(%arg0: i32, %arg1: i32, %arg2: i32, %arg3: memref<64x256xbf16, #tpu.memory_space<vmem>>, %arg4: memref<256x384xbf16, #tpu.memory_space<vmem>>, %arg5: memref<1x384xf32, #tpu.memory_space<vmem>>, %arg6: memref<64x384xf32, #tpu.memory_space<vmem>>) attributes {dimension_semantics = [#tpu.dimension_semantics<parallel>, #tpu.dimension_semantics<parallel>, #tpu.dimension_semantics<arbitrary>], iteration_bounds = array<i64: 2, 1, 1>, scalar_prefetch = 0 : i64, scratch_operands = 0 : i64, tpu.core_type = #tpu.core_type<tc>, window_params = [{transform_indices = @transform_0, window_bounds = array<i64: 64, 256>}, {transform_indices = @transform_1, window_bounds = array<i64: 256, 384>}, {transform_indices = @transform_2, window_bounds = array<i64: 1, 384>}, {transform_indices = @transform_3, window_bounds = array<i64: 64, 384>}]} {
    %c0_i32 = arith.constant 0 : i32
    %0 = arith.cmpi eq, %arg2, %c0_i32 : i32
    %1 = arith.extui %0 : i1 to i32
    %c0_i32_0 = arith.constant 0 : i32
    %2 = arith.cmpi ne, %1, %c0_i32_0 : i32
    scf.if %2 {
      %cst_10 = arith.constant 0.000000e+00 : f32
      %12 = vector.broadcast %cst_10 : f32 to vector<64x384xf32>
      %c0_11 = arith.constant 0 : index
      %c0_12 = arith.constant 0 : index
      %13 = vector.load %arg6[%c0_11, %c0_12] : memref<64x384xf32, #tpu.memory_space<vmem>>, vector<64x384xf32>
      tpu.vector_store %arg6[%c0_11, %c0_12], %12 {strides = array<i32>} : memref<64x384xf32, #tpu.memory_space<vmem>>, vector<64x384xf32>,
    } else {
    }
    %c0 = arith.constant 0 : index
    %c0_1 = arith.constant 0 : index
    %3 = vector.load %arg6[%c0, %c0_1] : memref<64x384xf32, #tpu.memory_space<vmem>>, vector<64x384xf32>
    %c0_2 = arith.constant 0 : index
    %c0_3 = arith.constant 0 : index
    %4 = vector.load %arg3[%c0_2, %c0_3] : memref<64x256xbf16, #tpu.memory_space<vmem>>, vector<64x256xbf16>
    %c0_4 = arith.constant 0 : index
    %c0_5 = arith.constant 0 : index
    %5 = vector.load %arg4[%c0_4, %c0_5] : memref<256x384xbf16, #tpu.memory_space<vmem>>, vector<256x384xbf16>
    %cst = arith.constant dense<0.000000e+00> : vector<64x384xf32>
    %6 = tpu.matmul %4, %5, %cst {dimension_numbers = #tpu.dot_dimension_numbers<[1], [0], [0], [1], [0, 0, 1, 1], [], []>} : vector<64x256xbf16>, vector<256x384xbf16>, vector<64x384xf32> -> vector<64x384xf32>
    %7 = arith.addf %3, %6 : vector<64x384xf32>
    %c0_6 = arith.constant 0 : index
    %c0_7 = arith.constant 0 : index
    %8 = vector.load %arg6[%c0_6, %c0_7] : memref<64x384xf32, #tpu.memory_space<vmem>>, vector<64x384xf32>
    tpu.vector_store %arg6[%c0_6, %c0_7], %7 {strides = array<i32>} : memref<64x384xf32, #tpu.memory_space<vmem>>, vector<64x384xf32>,
    %c0_i32_8 = arith.constant 0 : i32
    %9 = arith.cmpi eq, %arg2, %c0_i32_8 : i32
    %10 = arith.extui %9 : i1 to i32
    %c0_i32_9 = arith.constant 0 : i32
    %11 = arith.cmpi ne, %10, %c0_i32_9 : i32
    scf.if %11 {
      %c0_10 = arith.constant 0 : index
      %c0_11 = arith.constant 0 : index
      %12 = vector.load %arg6[%c0_10, %c0_11] : memref<64x384xf32, #tpu.memory_space<vmem>>, vector<64x384xf32>
      %c0_12 = arith.constant 0 : index
      %c0_13 = arith.constant 0 : index
      %13 = vector.load %arg5[%c0_12, %c0_13] : memref<1x384xf32, #tpu.memory_space<vmem>>, vector<1x384xf32>
      %14 = vector.broadcast %13 : vector<1x384xf32> to vector<64x384xf32>
      %15 = arith.addf %12, %14 : vector<64x384xf32>
      %cst_14 = arith.constant 0.000000e+00 : f32
      %16 = vector.broadcast %cst_14 : f32 to vector<64x384xf32>
      %17 = arith.maximumf %15, %16 : vector<64x384xf32>
      %c0_15 = arith.constant 0 : index
      %c0_16 = arith.constant 0 : index
      %18 = vector.load %arg6[%c0_15, %c0_16] : memref<64x384xf32, #tpu.memory_space<vmem>>, vector<64x384xf32>
      tpu.vector_store %arg6[%c0_15, %c0_16], %17 {strides = array<i32>} : memref<64x384xf32, #tpu.memory_space<vmem>>, vector<64x384xf32>,
    } else {
    }
    return
  }
  func.func @transform_0(%arg0: i32, %arg1: i32, %arg2: i32) -> (i32, i32) {
    %c0_i32 = arith.constant 0 : i32
    return %arg0, %arg2 : i32, i32
  }
  func.func @transform_1(%arg0: i32, %arg1: i32, %arg2: i32) -> (i32, i32) {
    %c0_i32 = arith.constant 0 : i32
    return %arg2, %arg1 : i32, i32
  }
  func.func @transform_2(%arg0: i32, %arg1: i32, %arg2: i32) -> (i32, i32) {
    %c0_i32 = arith.constant 0 : i32
    %c0_i32_0 = arith.constant 0 : i32
    return %c0_i32, %arg1 : i32, i32
  }
  func.func @transform_3(%arg0: i32, %arg1: i32, %arg2: i32) -> (i32, i32) {
    %c0_i32 = arith.constant 0 : i32
    return %arg0, %arg1 : i32, i32
  }
}

</mosaic_0001>

<llo_original>
// kernel: linear_relu_pallas.1
$region0: #{linear_relu_pallas.1}
  #allocation0 [shape = 'u32[]', space=smem, size = 0x4, offset = 0x4, fixed_abs, tag = 'smem constant byte address 0x4 - core index']
  #allocation1 [shape = 'u32[144,128]{1,0:T(1,128)}', space=vmem, size = 0x12000, scoped, tag = 'internal scratch']
  %s0 = inlined_call_operand.vmem [shape: bf16[128,256], index: 0, kind: input, shape index: {}]
  %s1 = inlined_call_operand.vmem [shape: bf16[256,384], index: 1, kind: input, shape index: {}]
  %s2 = inlined_call_operand.vmem [shape: f32[1,384], index: 2, kind: input, shape index: {}]
  %s3 = inlined_call_operand.hbm [shape: f32[128,384], index: 3, kind: output, shape index: {}]
  %s4 = sld [smem:[#allocation0]]
  $region53: #{linear_relu_pallas.1} parent=0
    _
  %s6 = ssub.s32 1, %s4
  %s7 = scalar_select 0, %s6, %s4
  $region1: #{linear_relu_pallas.1} parent=0
    #allocation2 [shape = 'u8[196608]{0}', space=vmem, size = 0x30000, scoped, tag = 'output window, operand 0']
    #allocation3 [shape = 's32[2]{0}', space=sflag, size = 0x8, scoped, tag = 'scoped memory for linear_relu_pallas.1']
    %8 = vsyncpa [#allocation3], 0
    %s9 = scalar_lea.sflag [#allocation3], 1
    %10 = vsyncpa %s9, 0
    loop: start=0, step=1, limit=4
    $region2: #{linear_relu_pallas.1} parent=1 // loop_pre_header
      _
    $region3: #{linear_relu_pallas.1} parent=1 // loop_header
      %s12 = sphi 0, %s16
      %p13 = scmp.ge.s32.totalorder %s12, 4
      %s19 = sphi 0, %s38
      %s20 = sphi 0, %s34
      %s21 = sphi 0, %s30
      %s22 = sphi 0, %s19
      %s23 = sphi 0, %s20
      %s24 = sphi 0, %s21
      %s25 = sphi 0, %s22
      %s26 = sphi 0, %s23
      %s27 = sphi 0, %s24
      %s43 = sphi 0, %s45
      %s46 = sphi 0, %s43
      %s47 = sphi 0, %s46
      %s63 = sphi 0, %s47
      %s71 = sphi 0, %s73
      %s74 = sphi 0, %s71
      %s75 = sphi 0, %s74
      %s91 = sphi 0, %s75
      %s97 = sphi 0, %s99
      %s100 = sphi 0, %s97
      %s101 = sphi 0, %s100
      %s117 = sphi 0, %s101
      %s125 = sphi 0, %s127
      %s128 = sphi 0, %s125
      %s129 = sphi 0, %s128
      %s145 = sphi 0, %s129
    $region4: #{linear_relu_pallas.1} parent=1 // loop_header_branch
      %15 = sbr.rel (%p13) target = $region8
    $region5: #{linear_relu_pallas.1} parent=1 // loop_body
      %s17 = ssub.s32 %s12, 1
      %s18 = ssub.s32 %s12, 2
      %s28 = sadd.s32 1, %s21
      %p29 = scmp.ge.s32.totalorder %s28, 1
      %s30 = scalar_select %p29, 0, %s28
      %s31 = sadd.s32 1, %s20
      %s32 = scalar_select %p29, %s31, %s20
      %p33 = scmp.ge.s32.totalorder %s32, 1
      %s34 = scalar_select %p33, 0, %s32
      %s35 = sadd.s32 1, %s19
      %s36 = scalar_select %p33, %s35, %s19
      %p37 = scmp.ge.s32.totalorder %s36, 2
      %s38 = scalar_select %p37, 0, %s36
      %s39 = ssub.s32 %s19, %s38
      %s40 = ssub.s32 %s21, %s30
      %s41 = sor.u32 %s39, %s40
      %p42 = scmp.eq.s32.totalorder %s41, 0
      %s44 = sadd.s32 %s43, 1
      %s45 = scalar_select %p42, %s43, %s44
      %p48 = pneg %p42
      %p49 = scmp.eq.s32.totalorder %s12, 1
      %p50 = por %p48, %p49
      %p51 = scmp.ne.s32.totalorder %s43, %s46
      %p52 = scmp.eq.s32.totalorder %s12, 0
      %p53 = por %p51, %p52
      %p54 = scmp.ne.s32.totalorder %s43, %s46
      %p55 = scmp.eq.s32.totalorder %s17, 1
      %p56 = por %p54, %p55
      %p57 = scmp.ne.s32.totalorder %s46, %s47
      %p58 = scmp.eq.s32.totalorder %s17, 0
      %p59 = por %p57, %p58
      %p60 = scmp.ne.s32.totalorder %s46, %s47
      %p61 = scmp.eq.s32.totalorder %s18, 1
      %p62 = por %p60, %p61
      %p64 = scmp.ne.s32.totalorder %s47, %s63
      %p65 = scmp.eq.s32.totalorder %s18, 0
      %p66 = por %p64, %p65
      %s67 = ssub.s32 %s21, %s30
      %s68 = ssub.s32 %s20, %s34
      %s69 = sor.u32 %s67, %s68
      %p70 = scmp.eq.s32.totalorder %s69, 0
      %s72 = sadd.s32 %s71, 1
      %s73 = scalar_select %p70, %s71, %s72
      %p76 = pneg %p70
      %p77 = scmp.eq.s32.totalorder %s12, 1
      %p78 = por %p76, %p77
      %p79 = scmp.ne.s32.totalorder %s71, %s74
      %p80 = scmp.eq.s32.totalorder %s12, 0
      %p81 = por %p79, %p80
      %p82 = scmp.ne.s32.totalorder %s71, %s74
      %p83 = scmp.eq.s32.totalorder %s17, 1
      %p84 = por %p82, %p83
      %p85 = scmp.ne.s32.totalorder %s74, %s75
      %p86 = scmp.eq.s32.totalorder %s17, 0
      %p87 = por %p85, %p86
      %p88 = scmp.ne.s32.totalorder %s74, %s75
      %p89 = scmp.eq.s32.totalorder %s18, 1
      %p90 = por %p88, %p89
      %p92 = scmp.ne.s32.totalorder %s75, %s91
      %p93 = scmp.eq.s32.totalorder %s18, 0
      %p94 = por %p92, %p93
      %s95 = ssub.s32 %s20, %s34
      %p96 = scmp.eq.s32.totalorder %s95, 0
      %s98 = sadd.s32 %s97, 1
      %s99 = scalar_select %p96, %s97, %s98
      %p102 = pneg %p96
      %p103 = scmp.eq.s32.totalorder %s12, 1
      %p104 = por %p102, %p103
      %p105 = scmp.ne.s32.totalorder %s97, %s100
      %p106 = scmp.eq.s32.totalorder %s12, 0
      %p107 = por %p105, %p106
      %p108 = scmp.ne.s32.totalorder %s97, %s100
      %p109 = scmp.eq.s32.totalorder %s17, 1
      %p110 = por %p108, %p109
      %p111 = scmp.ne.s32.totalorder %s100, %s101
      %p112 = scmp.eq.s32.totalorder %s17, 0
      %p113 = por %p111, %p112
      %p114 = scmp.ne.s32.totalorder %s100, %s101
      %p115 = scmp.eq.s32.totalorder %s18, 1
      %p116 = por %p114, %p115
      %p118 = scmp.ne.s32.totalorder %s101, %s117
      %p119 = scmp.eq.s32.totalorder %s18, 0
      %p120 = por %p118, %p119
      %s121 = ssub.s32 %s19, %s38
      %s122 = ssub.s32 %s20, %s34
      %s123 = sor.u32 %s121, %s122
      %p124 = scmp.eq.s32.totalorder %s123, 0
      %s126 = sadd.s32 %s125, 1
      %s127 = scalar_select %p124, %s125, %s126
      %p130 = pneg %p124
      %p131 = scmp.eq.s32.totalorder %s12, 1
      %p132 = por %p130, %p131
      %p133 = scmp.ne.s32.totalorder %s125, %s128
      %p134 = scmp.eq.s32.totalorder %s12, 0
      %p135 = por %p133, %p134
      %p136 = scmp.ne.s32.totalorder %s125, %s128
      %p137 = scmp.eq.s32.totalorder %s17, 1
      %p138 = por %p136, %p137
      %p139 = scmp.ne.s32.totalorder %s128, %s129
      %p140 = scmp.eq.s32.totalorder %s17, 0
      %p141 = por %p139, %p140
      %p142 = scmp.ne.s32.totalorder %s128, %s129
      %p143 = scmp.eq.s32.totalorder %s18, 1
      %p144 = por %p142, %p143
      %p146 = scmp.ne.s32.totalorder %s129, %s145
      %p147 = scmp.eq.s32.totalorder %s18, 0
      %p148 = por %p146, %p147
      %p149 = scmp.le.s32.totalorder 1, %s12
      %p150 = scmp.lt.s32.totalorder %s12, 3
      %p151 = pnand %p149, %p150
      %p152 = pneg %p151
      // Predicated region
      $region9: #{linear_relu_pallas.1} parent=5 // pred_check
        _
      $region10: #{linear_relu_pallas.1} parent=5 // pred_check_branch
        %154 = sbr.rel (%p151) target = $region12
      $region11: #{linear_relu_pallas.1} parent=5 // pred_region
        %s155 = ssub.s32 %s12, 1
        // Predicated region
        $region13: #{linear_relu_pallas.1} parent=11 // pred_check
          %p156 = pneg %p87
        $region14: #{linear_relu_pallas.1} parent=11 // pred_check_branch
          %158 = sbr.rel (%p156) target = $region16
        $region15: #{linear_relu_pallas.1} parent=11 // pred_region
          %s159 = smul.u32 32, %s24
          %s160 = smul.u32 3, %s23
          %p161 = scmp.lt.s32.totalorder %s159, 31
          %s162 = scalar_select %p161, %s159, 31
          %p163 = scmp.lt.s32.totalorder %s160, 2
          %s164 = scalar_select %p163, %s160, 2
          %s165 = smul.addr %s162, 3
          %s166 = sadd.s32 %s164, %s165
          %s167 = smul.addr %s166, 4
          %s168 = scalar_lea.vmem %s1, %s167
          %s169 = smul.u32 32, %s24
          %s170 = smul.u32 3, %s23
        $region16: #{linear_relu_pallas.1} parent=11 // pred_fallthru
          _
        // Predicated region
        $region17: #{linear_relu_pallas.1} parent=11 // pred_check
          %p171 = pneg %p113
        $region18: #{linear_relu_pallas.1} parent=11 // pred_check_branch
          %173 = sbr.rel (%p171) target = $region20
        $region19: #{linear_relu_pallas.1} parent=11 // pred_region
          %s174 = smul.u32 3, %s23
          %p175 = scmp.lt.s32.totalorder %s174, 2
          %s176 = scalar_select %p175, %s174, 2
          %s177 = scalar_lea.vmem %s2, %s176
          %s178 = smul.u32 3, %s23
        $region20: #{linear_relu_pallas.1} parent=11 // pred_fallthru
          _
      $region12: #{linear_relu_pallas.1} parent=5 // pred_fallthru
        _
      %p179 = scmp.lt.s32.totalorder %s12, 2
      // Predicated region
      $region21: #{linear_relu_pallas.1} parent=5 // pred_check
        %p180 = pneg %p179
      $region22: #{linear_relu_pallas.1} parent=5 // pred_check_branch
        %182 = sbr.rel (%p180) target = $region24
      $region23: #{linear_relu_pallas.1} parent=5 // pred_region
        // Predicated region
        $region25: #{linear_relu_pallas.1} parent=23 // pred_check
          %p183 = pneg %p53
        $region26: #{linear_relu_pallas.1} parent=23 // pred_check_branch
          %185 = sbr.rel (%p183) target = $region28
        $region27: #{linear_relu_pallas.1} parent=23 // pred_region
          %s186 = smul.u32 8, %s19
          %s187 = smul.u32 2, %s21
          %p188 = scmp.lt.s32.totalorder %s186, 15
          %s189 = scalar_select %p188, %s186, 15
          %p190 = scmp.lt.s32.totalorder %s187, 1
          %s191 = scalar_select %p190, %s187, 1
          %s192 = smul.addr %s189, 2
          %s193 = sadd.s32 %s191, %s192
          %s194 = smul.addr %s193, 4
          %s195 = scalar_lea.vmem %s0, %s194
          %s196 = smul.u32 8, %s19
          %s197 = smul.u32 2, %s21
        $region28: #{linear_relu_pallas.1} parent=23 // pred_fallthru
          _
      $region24: #{linear_relu_pallas.1} parent=5 // pred_fallthru
        _
      %p198 = scmp.le.s32.totalorder 1, %s12
      %p199 = scmp.lt.s32.totalorder %s12, 3
      %p200 = pnand %p198, %p199
      %p201 = pneg %p200
      // Predicated region
      $region29: #{linear_relu_pallas.1} parent=5 // pred_check
        _
      $region30: #{linear_relu_pallas.1} parent=5 // pred_check_branch
        %203 = sbr.rel (%p200) target = $region32
      $region31: #{linear_relu_pallas.1} parent=5 // pred_region
        %s204 = ssub.s32 %s12, 1
        %s205 = smul.u32 8, %s22
        %s206 = smul.u32 2, %s24
        %p207 = scmp.lt.s32.totalorder %s205, 15
        %s208 = scalar_select %p207, %s205, 15
        %p209 = scmp.lt.s32.totalorder %s206, 1
        %s210 = scalar_select %p209, %s206, 1
        %s211 = smul.addr %s208, 2
        %s212 = sadd.s32 %s210, %s211
        %s213 = smul.addr %s212, 4
        %s214 = scalar_lea.vmem %s0, %s213
        %p215 = pneg %p59
        %p216 = pneg %p56
        %s217 = smul.u32 32, %s24
        %s218 = smul.u32 3, %s23
        %p219 = scmp.lt.s32.totalorder %s217, 31
        %s220 = scalar_select %p219, %s217, 31
        %p221 = scmp.lt.s32.totalorder %s218, 2
        %s222 = scalar_select %p221, %s218, 2
        %s223 = smul.addr %s220, 3
        %s224 = sadd.s32 %s222, %s223
        %s225 = smul.addr %s224, 4
        %s226 = scalar_lea.vmem %s1, %s225
        %p227 = pneg %p87
        %p228 = pneg %p84
        %s229 = smul.u32 3, %s23
        %p230 = scmp.lt.s32.totalorder %s229, 2
        %s231 = scalar_select %p230, %s229, 2
        %s232 = scalar_lea.vmem %s2, %s231
        %p233 = pneg %p113
        %p234 = pneg %p110
        %p235 = pneg %p141
        %p236 = pneg %p138
        %s237 = sand.u32 %s128, 1
        %s238 = scalar_lea.sflag [#allocation3], %s237
        %s239 = sand.u32 %s128, 1
        %s240 = smul.addr %s239, 192
        %s241 = scalar_lea.vmem [#allocation2], %s240
        %s242 = smul.u32 8, %s22
        %s243 = smul.u32 2, %s24
        %p244 = scmp.lt.s32.totalorder %s242, 15
        %s245 = scalar_select %p244, %s242, 15
        %p246 = scmp.lt.s32.totalorder %s243, 1
        %s247 = scalar_select %p246, %s243, 1
        %s248 = smul.addr %s245, 2
        %s249 = sadd.s32 %s247, %s248
        %s250 = smul.addr %s249, 4
        %s251 = scalar_lea.vmem %s0, %s250
        %s252 = smul.u32 8, %s22
        %s253 = smul.u32 2, %s24
        %s254 = smul.u32 32, %s24
        %s255 = smul.u32 3, %s23
        %p256 = scmp.lt.s32.totalorder %s254, 31
        %s257 = scalar_select %p256, %s254, 31
        %p258 = scmp.lt.s32.totalorder %s255, 2
        %s259 = scalar_select %p258, %s255, 2
        %s260 = smul.addr %s257, 3
        %s261 = sadd.s32 %s259, %s260
        %s262 = smul.addr %s261, 4
        %s263 = scalar_lea.vmem %s1, %s262
        %s264 = smul.u32 32, %s24
        %s265 = smul.u32 3, %s23
        %s266 = smul.u32 3, %s23
        %p267 = scmp.lt.s32.totalorder %s266, 2
        %s268 = scalar_select %p267, %s266, 2
        %s269 = scalar_lea.vmem %s2, %s268
        %s270 = smul.u32 3, %s23
        %s271 = smul.u32 8, %s22
        %s272 = smul.u32 3, %s23
        %p274 = scmp.eq.s32.totalorder %s24, 0
        // Predicated region
        $region33: #{linear_relu_pallas.1} parent=31 // pred_check
          %p275 = pneg %p274
        $region34: #{linear_relu_pallas.1} parent=31 // pred_check_branch
          %277 = sbr.rel (%p275) target = $region36
        $region35: #{linear_relu_pallas.1} parent=31 // pred_region
          %278 = vst [vmem:[%s241] sm:$0xff] 0.0
          %279 = vst [vmem:[%s241 + $0x8] sm:$0xff] 0.0
          %280 = vst [vmem:[%s241 + $0x10] sm:$0xff] 0.0
          %281 = vst [vmem:[%s241 + $0x18] sm:$0xff] 0.0
          %282 = vst [vmem:[%s241 + $0x20] sm:$0xff] 0.0
          %283 = vst [vmem:[%s241 + $0x28] sm:$0xff] 0.0
          %284 = vst [vmem:[%s241 + $0x30] sm:$0xff] 0.0
          %285 = vst [vmem:[%s241 + $0x38] sm:$0xff] 0.0
          %286 = vst [vmem:[%s241 + $0x40] sm:$0xff] 0.0
          %287 = vst [vmem:[%s241 + $0x48] sm:$0xff] 0.0
          %288 = vst [vmem:[%s241 + $0x50] sm:$0xff] 0.0
          %289 = vst [vmem:[%s241 + $0x58] sm:$0xff] 0.0
          %290 = vst [vmem:[%s241 + $0x60] sm:$0xff] 0.0
          %291 = vst [vmem:[%s241 + $0x68] sm:$0xff] 0.0
          %292 = vst [vmem:[%s241 + $0x70] sm:$0xff] 0.0
          %293 = vst [vmem:[%s241 + $0x78] sm:$0xff] 0.0
          %294 = vst [vmem:[%s241 + $0x80] sm:$0xff] 0.0
          %295 = vst [vmem:[%s241 + $0x88] sm:$0xff] 0.0
          %296 = vst [vmem:[%s241 + $0x90] sm:$0xff] 0.0
          %297 = vst [vmem:[%s241 + $0x98] sm:$0xff] 0.0
          %298 = vst [vmem:[%s241 + $0xa0] sm:$0xff] 0.0
          %299 = vst [vmem:[%s241 + $0xa8] sm:$0xff] 0.0
          %300 = vst [vmem:[%s241 + $0xb0] sm:$0xff] 0.0
          %301 = vst [vmem:[%s241 + $0xb8] sm:$0xff] 0.0
        $region36: #{linear_relu_pallas.1} parent=31 // pred_fallthru
          _
        %v302 = vld [vmem:[%s241] sm:$0xff]
        %v303 = vld [vmem:[%s241 + $0x8] sm:$0xff]
        %v304 = vld [vmem:[%s241 + $0x10] sm:$0xff]
        %v305 = vld [vmem:[%s241 + $0x18] sm:$0xff]
        %v306 = vld [vmem:[%s241 + $0x20] sm:$0xff]
        %v307 = vld [vmem:[%s241 + $0x28] sm:$0xff]
        %v308 = vld [vmem:[%s241 + $0x30] sm:$0xff]
        %v309 = vld [vmem:[%s241 + $0x38] sm:$0xff]
        %v310 = vld [vmem:[%s241 + $0x40] sm:$0xff]
        %v311 = vld [vmem:[%s241 + $0x48] sm:$0xff]
        %v312 = vld [vmem:[%s241 + $0x50] sm:$0xff]
        %v313 = vld [vmem:[%s241 + $0x58] sm:$0xff]
        %v314 = vld [vmem:[%s241 + $0x60] sm:$0xff]
        %v315 = vld [vmem:[%s241 + $0x68] sm:$0xff]
        %v316 = vld [vmem:[%s241 + $0x70] sm:$0xff]
        %v317 = vld [vmem:[%s241 + $0x78] sm:$0xff]
        %v318 = vld [vmem:[%s241 + $0x80] sm:$0xff]
        %v319 = vld [vmem:[%s241 + $0x88] sm:$0xff]
        %v320 = vld [vmem:[%s241 + $0x90] sm:$0xff]
        %v321 = vld [vmem:[%s241 + $0x98] sm:$0xff]
        %v322 = vld [vmem:[%s241 + $0xa0] sm:$0xff]
        %v323 = vld [vmem:[%s241 + $0xa8] sm:$0xff]
        %v324 = vld [vmem:[%s241 + $0xb0] sm:$0xff]
        %v325 = vld [vmem:[%s241 + $0xb8] sm:$0xff]
        %v326 = vld [vmem:[%s251] sm:$0xff]
        %v327 = vld [vmem:[%s251 + $0x8] sm:$0xff]
        %v328 = vld [vmem:[%s251 + $0x10] sm:$0xff]
        %v329 = vld [vmem:[%s251 + $0x18] sm:$0xff]
        %v330 = vld [vmem:[%s251 + $0x20] sm:$0xff]
        %v331 = vld [vmem:[%s251 + $0x28] sm:$0xff]
        %v332 = vld [vmem:[%s251 + $0x30] sm:$0xff]
        %v333 = vld [vmem:[%s251 + $0x38] sm:$0xff]
        %v334 = vld [vmem:[%s263] sm:$0xff]
        %v335 = vld [vmem:[%s263 + $0x8] sm:$0xf]
        %v336 = vld [vmem:[%s263 + $0xc] sm:$0xff]
        %v337 = vld [vmem:[%s263 + $0x14] sm:$0xf]
        %v338 = vld [vmem:[%s263 + $0x18] sm:$0xff]
        %v339 = vld [vmem:[%s263 + $0x20] sm:$0xf]
        %v340 = vld [vmem:[%s263 + $0x24] sm:$0xff]
        %v341 = vld [vmem:[%s263 + $0x2c] sm:$0xf]
        %v342 = vld [vmem:[%s263 + $0x30] sm:$0xff]
        %v343 = vld [vmem:[%s263 + $0x38] sm:$0xf]
        %v344 = vld [vmem:[%s263 + $0x3c] sm:$0xff]
        %v345 = vld [vmem:[%s263 + $0x44] sm:$0xf]
        %v346 = vld [vmem:[%s263 + $0x48] sm:$0xff]
        %v347 = vld [vmem:[%s263 + $0x50] sm:$0xf]
        %v348 = vld [vmem:[%s263 + $0x54] sm:$0xff]
        %v349 = vld [vmem:[%s263 + $0x5c] sm:$0xf]
        %v350 = vld [vmem:[%s263 + $0x60] sm:$0xff]
        %v351 = vld [vmem:[%s263 + $0x68] sm:$0xf]
        %v352 = vld [vmem:[%s263 + $0x6c] sm:$0xff]
        %v353 = vld [vmem:[%s263 + $0x74] sm:$0xf]
        %v354 = vld [vmem:[%s263 + $0x78] sm:$0xff]
        %v355 = vld [vmem:[%s263 + $0x80] sm:$0xf]
        %v356 = vld [vmem:[%s263 + $0x84] sm:$0xff]
        %v357 = vld [vmem:[%s263 + $0x8c] sm:$0xf]
        %v358 = vld [vmem:[%s263 + $0x90] sm:$0xff]
        %v359 = vld [vmem:[%s263 + $0x98] sm:$0xf]
        %v360 = vld [vmem:[%s263 + $0x9c] sm:$0xff]
        %v361 = vld [vmem:[%s263 + $0xa4] sm:$0xf]
        %v362 = vld [vmem:[%s263 + $0xa8] sm:$0xff]
        %v363 = vld [vmem:[%s263 + $0xb0] sm:$0xf]
        %v364 = vld [vmem:[%s263 + $0xb4] sm:$0xff]
        %v365 = vld [vmem:[%s263 + $0xbc] sm:$0xf]
        %v366 = vld [vmem:[%s263 + $0xc0] sm:$0xff]
        %v367 = vld [vmem:[%s263 + $0xc8] sm:$0xf]
        %v368 = vld [vmem:[%s263 + $0xcc] sm:$0xff]
        %v369 = vld [vmem:[%s263 + $0xd4] sm:$0xf]
        %v370 = vld [vmem:[%s263 + $0xd8] sm:$0xff]
        %v371 = vld [vmem:[%s263 + $0xe0] sm:$0xf]
        %v372 = vld [vmem:[%s263 + $0xe4] sm:$0xff]
        %v373 = vld [vmem:[%s263 + $0xec] sm:$0xf]
        %v374 = vld [vmem:[%s263 + $0xf0] sm:$0xff]
        %v375 = vld [vmem:[%s263 + $0xf8] sm:$0xf]
        %v376 = vld [vmem:[%s263 + $0xfc] sm:$0xff]
        %v377 = vld [vmem:[%s263 + $0x104] sm:$0xf]
        %v378 = vld [vmem:[%s263 + $0x108] sm:$0xff]
        %v379 = vld [vmem:[%s263 + $0x110] sm:$0xf]
        %v380 = vld [vmem:[%s263 + $0x114] sm:$0xff]
        %v381 = vld [vmem:[%s263 + $0x11c] sm:$0xf]
        %v382 = vld [vmem:[%s263 + $0x120] sm:$0xff]
        %v383 = vld [vmem:[%s263 + $0x128] sm:$0xf]
        %v384 = vld [vmem:[%s263 + $0x12c] sm:$0xff]
        %v385 = vld [vmem:[%s263 + $0x134] sm:$0xf]
        %v386 = vld [vmem:[%s263 + $0x138] sm:$0xff]
        %v387 = vld [vmem:[%s263 + $0x140] sm:$0xf]
        %v388 = vld [vmem:[%s263 + $0x144] sm:$0xff]
        %v389 = vld [vmem:[%s263 + $0x14c] sm:$0xf]
        %v390 = vld [vmem:[%s263 + $0x150] sm:$0xff]
        %v391 = vld [vmem:[%s263 + $0x158] sm:$0xf]
        %v392 = vld [vmem:[%s263 + $0x15c] sm:$0xff]
        %v393 = vld [vmem:[%s263 + $0x164] sm:$0xf]
        %v394 = vld [vmem:[%s263 + $0x168] sm:$0xff]
        %v395 = vld [vmem:[%s263 + $0x170] sm:$0xf]
        %v396 = vld [vmem:[%s263 + $0x174] sm:$0xff]
        %v397 = vld [vmem:[%s263 + $0x17c] sm:$0xf]
        %v406 = vunpack.c.l.b16 %v326
        %v407 = vunpack.c.h.b16 %v326
        %v408 = vunpack.c.l.b16 %v327
        %v409 = vunpack.c.h.b16 %v327
        %v410 = vunpack.c.l.b16 %v328
        %v411 = vunpack.c.h.b16 %v328
        %v412 = vunpack.c.l.b16 %v329
        %v413 = vunpack.c.h.b16 %v329
        %v414 = vunpack.c.l.b16 %v330
        %v415 = vunpack.c.h.b16 %v330
        %v416 = vunpack.c.l.b16 %v331
        %v417 = vunpack.c.h.b16 %v331
        %v418 = vunpack.c.l.b16 %v332
        %v419 = vunpack.c.h.b16 %v332
        %v420 = vunpack.c.l.b16 %v333
        %v421 = vunpack.c.h.b16 %v333
        %v422 = vpack.c.b16 %v408, %v406
        %v423 = vpack.c.b16 %v409, %v407
        %v424 = vpack.c.b16 %v412, %v410
        %v425 = vpack.c.b16 %v413, %v411
        %v426 = vpack.c.b16 %v416, %v414
        %v427 = vpack.c.b16 %v417, %v415
        %v428 = vpack.c.b16 %v420, %v418
        %v429 = vpack.c.b16 %v421, %v419
        %v502 = vunpack.c.l.b16 %v334
        %v503 = vunpack.c.h.b16 %v334
        %v504 = vunpack.c.l.b16 %v335
        %v505 = vunpack.c.l.b16 %v336
        %v506 = vunpack.c.h.b16 %v336
        %v507 = vunpack.c.l.b16 %v337
        %v508 = vunpack.c.l.b16 %v338
        %v509 = vunpack.c.h.b16 %v338
        %v510 = vunpack.c.l.b16 %v339
        %v511 = vunpack.c.l.b16 %v340
        %v512 = vunpack.c.h.b16 %v340
        %v513 = vunpack.c.l.b16 %v341
        %v514 = vunpack.c.l.b16 %v342
        %v515 = vunpack.c.h.b16 %v342
        %v516 = vunpack.c.l.b16 %v343
        %v517 = vunpack.c.l.b16 %v344
        %v518 = vunpack.c.h.b16 %v344
        %v519 = vunpack.c.l.b16 %v345
        %v520 = vunpack.c.l.b16 %v346
        %v521 = vunpack.c.h.b16 %v346
        %v522 = vunpack.c.l.b16 %v347
        %v523 = vunpack.c.l.b16 %v348
        %v524 = vunpack.c.h.b16 %v348
        %v525 = vunpack.c.l.b16 %v349
        %v526 = vunpack.c.l.b16 %v350
        %v527 = vunpack.c.h.b16 %v350
        %v528 = vunpack.c.l.b16 %v351
        %v529 = vunpack.c.l.b16 %v352
        %v530 = vunpack.c.h.b16 %v352
        %v531 = vunpack.c.l.b16 %v353
        %v532 = vunpack.c.l.b16 %v354
        %v533 = vunpack.c.h.b16 %v354
        %v534 = vunpack.c.l.b16 %v355
        %v535 = vunpack.c.l.b16 %v356
        %v536 = vunpack.c.h.b16 %v356
        %v537 = vunpack.c.l.b16 %v357
        %v538 = vunpack.c.l.b16 %v358
        %v539 = vunpack.c.h.b16 %v358
        %v540 = vunpack.c.l.b16 %v359
        %v541 = vunpack.c.l.b16 %v360
        %v542 = vunpack.c.h.b16 %v360
        %v543 = vunpack.c.l.b16 %v361
        %v544 = vunpack.c.l.b16 %v362
        %v545 = vunpack.c.h.b16 %v362
        %v546 = vunpack.c.l.b16 %v363
        %v547 = vunpack.c.l.b16 %v364
        %v548 = vunpack.c.h.b16 %v364
        %v549 = vunpack.c.l.b16 %v365
        %v550 = vunpack.c.l.b16 %v366
        %v551 = vunpack.c.h.b16 %v366
        %v552 = vunpack.c.l.b16 %v367
        %v553 = vunpack.c.l.b16 %v368
        %v554 = vunpack.c.h.b16 %v368
        %v555 = vunpack.c.l.b16 %v369
        %v556 = vunpack.c.l.b16 %v370
        %v557 = vunpack.c.h.b16 %v370
        %v558 = vunpack.c.l.b16 %v371
        %v559 = vunpack.c.l.b16 %v372
        %v560 = vunpack.c.h.b16 %v372
        %v561 = vunpack.c.l.b16 %v373
        %v562 = vunpack.c.l.b16 %v374
        %v563 = vunpack.c.h.b16 %v374
        %v564 = vunpack.c.l.b16 %v375
        %v565 = vunpack.c.l.b16 %v376
        %v566 = vunpack.c.h.b16 %v376
        %v567 = vunpack.c.l.b16 %v377
        %v568 = vunpack.c.l.b16 %v378
        %v569 = vunpack.c.h.b16 %v378
        %v570 = vunpack.c.l.b16 %v379
        %v571 = vunpack.c.l.b16 %v380
        %v572 = vunpack.c.h.b16 %v380
        %v573 = vunpack.c.l.b16 %v381
        %v574 = vunpack.c.l.b16 %v382
        %v575 = vunpack.c.h.b16 %v382
        %v576 = vunpack.c.l.b16 %v383
        %v577 = vunpack.c.l.b16 %v384
        %v578 = vunpack.c.h.b16 %v384
        %v579 = vunpack.c.l.b16 %v385
        %v580 = vunpack.c.l.b16 %v386
        %v581 = vunpack.c.h.b16 %v386
        %v582 = vunpack.c.l.b16 %v387
        %v583 = vunpack.c.l.b16 %v388
        %v584 = vunpack.c.h.b16 %v388
        %v585 = vunpack.c.l.b16 %v389
        %v586 = vunpack.c.l.b16 %v390
        %v587 = vunpack.c.h.b16 %v390
        %v588 = vunpack.c.l.b16 %v391
        %v589 = vunpack.c.l.b16 %v392
        %v590 = vunpack.c.h.b16 %v392
        %v591 = vunpack.c.l.b16 %v393
        %v592 = vunpack.c.l.b16 %v394
        %v593 = vunpack.c.h.b16 %v394
        %v594 = vunpack.c.l.b16 %v395
        %v595 = vunpack.c.l.b16 %v396
        %v596 = vunpack.c.h.b16 %v396
        %v597 = vunpack.c.l.b16 %v397
        %v598 = vpack.c.b16 %v505, %v502
        %v599 = vpack.c.b16 %v506, %v503
        %v600 = vpack.c.b16 %v507, %v504
        %v601 = vpack.c.b16 %v511, %v508
        %v602 = vpack.c.b16 %v512, %v509
        %v603 = vpack.c.b16 %v513, %v510
        %v604 = vpack.c.b16 %v517, %v514
        %v605 = vpack.c.b16 %v518, %v515
        %v606 = vpack.c.b16 %v519, %v516
        %v607 = vpack.c.b16 %v523, %v520
        %v608 = vpack.c.b16 %v524, %v521
        %v609 = vpack.c.b16 %v525, %v522
        %v610 = vpack.c.b16 %v529, %v526
        %v611 = vpack.c.b16 %v530, %v527
        %v612 = vpack.c.b16 %v531, %v528
        %v613 = vpack.c.b16 %v535, %v532
        %v614 = vpack.c.b16 %v536, %v533
        %v615 = vpack.c.b16 %v537, %v534
        %v616 = vpack.c.b16 %v541, %v538
        %v617 = vpack.c.b16 %v542, %v539
        %v618 = vpack.c.b16 %v543, %v540
        %v619 = vpack.c.b16 %v547, %v544
        %v620 = vpack.c.b16 %v548, %v545
        %v621 = vpack.c.b16 %v549, %v546
        %v622 = vpack.c.b16 %v553, %v550
        %v623 = vpack.c.b16 %v554, %v551
        %v624 = vpack.c.b16 %v555, %v552
        %v625 = vpack.c.b16 %v559, %v556
        %v626 = vpack.c.b16 %v560, %v557
        %v627 = vpack.c.b16 %v561, %v558
        %v628 = vpack.c.b16 %v565, %v562
        %v629 = vpack.c.b16 %v566, %v563
        %v630 = vpack.c.b16 %v567, %v564
        %v631 = vpack.c.b16 %v571, %v568
        %v632 = vpack.c.b16 %v572, %v569
        %v633 = vpack.c.b16 %v573, %v570
        %v634 = vpack.c.b16 %v577, %v574
        %v635 = vpack.c.b16 %v578, %v575
        %v636 = vpack.c.b16 %v579, %v576
        %v637 = vpack.c.b16 %v583, %v580
        %v638 = vpack.c.b16 %v584, %v581
        %v639 = vpack.c.b16 %v585, %v582
        %v640 = vpack.c.b16 %v589, %v586
        %v641 = vpack.c.b16 %v590, %v587
        %v642 = vpack.c.b16 %v591, %v588
        %v643 = vpack.c.b16 %v595, %v592
        %v644 = vpack.c.b16 %v596, %v593
        %v645 = vpack.c.b16 %v597, %v594
        %694 = vmatprep.subr.bf16.mxu0 %v599
        %695 = vmatpush1.bf16.msra.mxu0 %v598
        %696 = vmatprep.subr.bf16.mxu0 %v602
        %697 = vmatpush1.bf16.msra.mxu0 %v601
        %698 = vmatprep.subr.bf16.mxu0 %v605
        %699 = vmatpush1.bf16.msra.mxu0 %v604
        %700 = vmatprep.subr.bf16.mxu0 %v608
        %701 = vmatpush1.bf16.msra.mxu0 %v607
        %702 = vmatprep.subr.bf16.mxu0 %v611
        %703 = vmatpush1.bf16.msra.mxu0 %v610
        %704 = vmatprep.subr.bf16.mxu0 %v614
        %705 = vmatpush1.bf16.msra.mxu0 %v613
        %706 = vmatprep.subr.bf16.mxu0 %v617
        %707 = vmatpush1.bf16.msra.mxu0 %v616
        %708 = vmatprep.subr.bf16.mxu0 %v620
        %709 = vmatpush1.bf16.msra.mxu0 %v619
        %710 = vmatprep.subr.bf16.mxu0 %v623
        %711 = vmatpush1.bf16.msra.mxu0 %v622
        %712 = vmatprep.subr.bf16.mxu0 %v626
        %713 = vmatpush1.bf16.msra.mxu0 %v625
        %714 = vmatprep.subr.bf16.mxu0 %v629
        %715 = vmatpush1.bf16.msra.mxu0 %v628
        %716 = vmatprep.subr.bf16.mxu0 %v632
        %717 = vmatpush1.bf16.msra.mxu0 %v631
        %718 = vmatprep.subr.bf16.mxu0 %v635
        %719 = vmatpush1.bf16.msra.mxu0 %v634
        %720 = vmatprep.subr.bf16.mxu0 %v638
        %721 = vmatpush1.bf16.msra.mxu0 %v637
        %722 = vmatprep.subr.bf16.mxu0 %v641
        %723 = vmatpush1.bf16.msra.mxu0 %v640
        %724 = vmatprep.subr.bf16.mxu0 %v644
        %725 = vmatpush1.bf16.msra.mxu0 %v643
        %726 = vmatprep.mubr.bf16.mxu0 %v423
        %727 = vmatmul.mubr.bf16.gmra.mrb[0].mxu0 %v422
        %v728 = vpop.f32.mrb[0].mxu0
        %v729 = vadd.f32 0.0, %v728
        %v730 = vpop.f32.mrb[0].mxu0
        %v731 = vadd.f32 0.0, %v730
        %v732 = vpop.f32.mrb[0].mxu0
        %v733 = vadd.f32 0.0, %v732
        %v734 = vpop.f32.mrb[0].mxu0
        %v735 = vadd.f32 0.0, %v734
        %736 = vmatprep.mubr.bf16.mxu0 %v425
        %737 = vmatmul.mubr.bf16.gmra.mrb[0].mxu0 %v424
        %v738 = vpop.f32.mrb[0].mxu0
        %v739 = vadd.f32 0.0, %v738
        %v740 = vpop.f32.mrb[0].mxu0
        %v741 = vadd.f32 0.0, %v740
        %v742 = vpop.f32.mrb[0].mxu0
        %v743 = vadd.f32 0.0, %v742
        %v744 = vpop.f32.mrb[0].mxu0
        %v745 = vadd.f32 0.0, %v744
        %746 = vmatprep.mubr.bf16.mxu0 %v427
        %747 = vmatmul.mubr.bf16.gmra.mrb[0].mxu0 %v426
        %v748 = vpop.f32.mrb[0].mxu0
        %v749 = vadd.f32 0.0, %v748
        %v750 = vpop.f32.mrb[0].mxu0
        %v751 = vadd.f32 0.0, %v750
        %v752 = vpop.f32.mrb[0].mxu0
        %v753 = vadd.f32 0.0, %v752
        %v754 = vpop.f32.mrb[0].mxu0
        %v755 = vadd.f32 0.0, %v754
        %756 = vmatprep.mubr.bf16.mxu0 %v429
        %757 = vmatmul.mubr.bf16.gmra.mrb[0].mxu0 %v428
        %v758 = vpop.f32.mrb[0].mxu0
        %v759 = vadd.f32 0.0, %v758
        %v760 = vpop.f32.mrb[0].mxu0
        %v761 = vadd.f32 0.0, %v760
        %v762 = vpop.f32.mrb[0].mxu0
        %v763 = vadd.f32 0.0, %v762
        %v764 = vpop.f32.mrb[0].mxu0
        %v765 = vadd.f32 0.0, %v764
        %766 = vdwg.mxu0
        %767 = vmatprep.subr.bf16.mxu0 0
        %768 = vmatpush1.bf16.msra.mxu0 %v600
        %769 = vmatprep.subr.bf16.mxu0 0
        %770 = vmatpush1.bf16.msra.mxu0 %v603
        %771 = vmatprep.subr.bf16.mxu0 0
        %772 = vmatpush1.bf16.msra.mxu0 %v606
        %773 = vmatprep.subr.bf16.mxu0 0
        %774 = vmatpush1.bf16.msra.mxu0 %v609
        %775 = vmatprep.subr.bf16.mxu0 0
        %776 = vmatpush1.bf16.msra.mxu0 %v612
        %777 = vmatprep.subr.bf16.mxu0 0
        %778 = vmatpush1.bf16.msra.mxu0 %v615
        %779 = vmatprep.subr.bf16.mxu0 0
        %780 = vmatpush1.bf16.msra.mxu0 %v618
        %781 = vmatprep.subr.bf16.mxu0 0
        %782 = vmatpush1.bf16.msra.mxu0 %v621
        %783 = vmatprep.subr.bf16.mxu0 0
        %784 = vmatpush1.bf16.msra.mxu0 %v624
        %785 = vmatprep.subr.bf16.mxu0 0
        %786 = vmatpush1.bf16.msra.mxu0 %v627
        %787 = vmatprep.subr.bf16.mxu0 0
        %788 = vmatpush1.bf16.msra.mxu0 %v630
        %789 = vmatprep.subr.bf16.mxu0 0
        %790 = vmatpush1.bf16.msra.mxu0 %v633
        %791 = vmatprep.subr.bf16.mxu0 0
        %792 = vmatpush1.bf16.msra.mxu0 %v636
        %793 = vmatprep.subr.bf16.mxu0 0
        %794 = vmatpush1.bf16.msra.mxu0 %v639
        %795 = vmatprep.subr.bf16.mxu0 0
        %796 = vmatpush1.bf16.msra.mxu0 %v642
        %797 = vmatprep.subr.bf16.mxu0 0
        %798 = vmatpush1.bf16.msra.mxu0 %v645
        %799 = vmatprep.mubr.bf16.mxu0 %v423
        %800 = vmatmul.mubr.bf16.gmra.mrb[0].mxu0 %v422
        %v801 = vpop.f32.mrb[0].mxu0
        %v802 = vadd.f32 0.0, %v801
        %v803 = vpop.f32.mrb[0].mxu0
        %v804 = vpop.f32.mrb[0].mxu0
        %v805 = vadd.f32 0.0, %v804
        %v806 = vpop.f32.mrb[0].mxu0
        %807 = vmatprep.mubr.bf16.mxu0 %v425
        %808 = vmatmul.mubr.bf16.gmra.mrb[0].mxu0 %v424
        %v809 = vpop.f32.mrb[0].mxu0
        %v810 = vadd.f32 0.0, %v809
        %v811 = vpop.f32.mrb[0].mxu0
        %v812 = vpop.f32.mrb[0].mxu0
        %v813 = vadd.f32 0.0, %v812
        %v814 = vpop.f32.mrb[0].mxu0
        %815 = vmatprep.mubr.bf16.mxu0 %v427
        %816 = vmatmul.mubr.bf16.gmra.mrb[0].mxu0 %v426
        %v817 = vpop.f32.mrb[0].mxu0
        %v818 = vadd.f32 0.0, %v817
        %v819 = vpop.f32.mrb[0].mxu0
        %v820 = vpop.f32.mrb[0].mxu0
        %v821 = vadd.f32 0.0, %v820
        %v822 = vpop.f32.mrb[0].mxu0
        %823 = vmatprep.mubr.bf16.mxu0 %v429
        %824 = vmatmul.mubr.bf16.gmra.mrb[0].mxu0 %v428
        %v825 = vpop.f32.mrb[0].mxu0
        %v826 = vadd.f32 0.0, %v825
        %v827 = vpop.f32.mrb[0].mxu0
        %v828 = vpop.f32.mrb[0].mxu0
        %v829 = vadd.f32 0.0, %v828
        %v830 = vpop.f32.mrb[0].mxu0
        %831 = vdwg.mxu0
        %v832 = vadd.f32 %v302, %v729
        %v833 = vadd.f32 %v303, %v731
        %v834 = vadd.f32 %v304, %v802
        %v835 = vadd.f32 %v305, %v733
        %v836 = vadd.f32 %v306, %v735
        %v837 = vadd.f32 %v307, %v805
        %v838 = vadd.f32 %v308, %v739
        %v839 = vadd.f32 %v309, %v741
        %v840 = vadd.f32 %v310, %v810
        %v841 = vadd.f32 %v311, %v743
        %v842 = vadd.f32 %v312, %v745
        %v843 = vadd.f32 %v313, %v813
        %v844 = vadd.f32 %v314, %v749
        %v845 = vadd.f32 %v315, %v751
        %v846 = vadd.f32 %v316, %v818
        %v847 = vadd.f32 %v317, %v753
        %v848 = vadd.f32 %v318, %v755
        %v849 = vadd.f32 %v319, %v821
        %v850 = vadd.f32 %v320, %v759
        %v851 = vadd.f32 %v321, %v761
        %v852 = vadd.f32 %v322, %v826
        %v853 = vadd.f32 %v323, %v763
        %v854 = vadd.f32 %v324, %v765
        %v855 = vadd.f32 %v325, %v829
        %856 = vst [vmem:[%s241] sm:$0xff] %v832
        %857 = vst [vmem:[%s241 + $0x8] sm:$0xff] %v833
        %858 = vst [vmem:[%s241 + $0x10] sm:$0xff] %v834
        %859 = vst [vmem:[%s241 + $0x18] sm:$0xff] %v835
        %860 = vst [vmem:[%s241 + $0x20] sm:$0xff] %v836
        %861 = vst [vmem:[%s241 + $0x28] sm:$0xff] %v837
        %862 = vst [vmem:[%s241 + $0x30] sm:$0xff] %v838
        %863 = vst [vmem:[%s241 + $0x38] sm:$0xff] %v839
        %864 = vst [vmem:[%s241 + $0x40] sm:$0xff] %v840
        %865 = vst [vmem:[%s241 + $0x48] sm:$0xff] %v841
        %866 = vst [vmem:[%s241 + $0x50] sm:$0xff] %v842
        %867 = vst [vmem:[%s241 + $0x58] sm:$0xff] %v843
        %868 = vst [vmem:[%s241 + $0x60] sm:$0xff] %v844
        %869 = vst [vmem:[%s241 + $0x68] sm:$0xff] %v845
        %870 = vst [vmem:[%s241 + $0x70] sm:$0xff] %v846
        %871 = vst [vmem:[%s241 + $0x78] sm:$0xff] %v847
        %872 = vst [vmem:[%s241 + $0x80] sm:$0xff] %v848
        %873 = vst [vmem:[%s241 + $0x88] sm:$0xff] %v849
        %874 = vst [vmem:[%s241 + $0x90] sm:$0xff] %v850
        %875 = vst [vmem:[%s241 + $0x98] sm:$0xff] %v851
        %876 = vst [vmem:[%s241 + $0xa0] sm:$0xff] %v852
        %877 = vst [vmem:[%s241 + $0xa8] sm:$0xff] %v853
        %878 = vst [vmem:[%s241 + $0xb0] sm:$0xff] %v854
        %879 = vst [vmem:[%s241 + $0xb8] sm:$0xff] %v855
        // Predicated region
        $region37: #{linear_relu_pallas.1} parent=31 // pred_check
          %p880 = pneg %p274
        $region38: #{linear_relu_pallas.1} parent=31 // pred_check_branch
          %882 = sbr.rel (%p880) target = $region40
        $region39: #{linear_relu_pallas.1} parent=31 // pred_region
          %v883 = vld [vmem:[%s241] sm:$0xff]
          %v884 = vld [vmem:[%s241 + $0x8] sm:$0xff]
          %v885 = vld [vmem:[%s241 + $0x10] sm:$0xff]
          %v886 = vld [vmem:[%s241 + $0x18] sm:$0xff]
          %v887 = vld [vmem:[%s241 + $0x20] sm:$0xff]
          %v888 = vld [vmem:[%s241 + $0x28] sm:$0xff]
          %v889 = vld [vmem:[%s241 + $0x30] sm:$0xff]
          %v890 = vld [vmem:[%s241 + $0x38] sm:$0xff]
          %v891 = vld [vmem:[%s241 + $0x40] sm:$0xff]
          %v892 = vld [vmem:[%s241 + $0x48] sm:$0xff]
          %v893 = vld [vmem:[%s241 + $0x50] sm:$0xff]
          %v894 = vld [vmem:[%s241 + $0x58] sm:$0xff]
          %v895 = vld [vmem:[%s241 + $0x60] sm:$0xff]
          %v896 = vld [vmem:[%s241 + $0x68] sm:$0xff]
          %v897 = vld [vmem:[%s241 + $0x70] sm:$0xff]
          %v898 = vld [vmem:[%s241 + $0x78] sm:$0xff]
          %v899 = vld [vmem:[%s241 + $0x80] sm:$0xff]
          %v900 = vld [vmem:[%s241 + $0x88] sm:$0xff]
          %v901 = vld [vmem:[%s241 + $0x90] sm:$0xff]
          %v902 = vld [vmem:[%s241 + $0x98] sm:$0xff]
          %v903 = vld [vmem:[%s241 + $0xa0] sm:$0xff]
          %v904 = vld [vmem:[%s241 + $0xa8] sm:$0xff]
          %v905 = vld [vmem:[%s241 + $0xb0] sm:$0xff]
          %v906 = vld [vmem:[%s241 + $0xb8] sm:$0xff]
          %v907 = vld [vmem:[%s269] sm:$0x7]
          %v909 = vlaneseq
          %v910 = vshrl.u32 %v909, 7
          %v911 = vsub.s32 0, %v910
          %v912 = vrot.slane %v907, %v911
          %v913 = vlaneseq
          %v914 = vshrl.u32 %v913, 7
          %v915 = vsub.s32 1, %v914
          %v916 = vrot.slane %v907, %v915
          %v917 = vlaneseq
          %v918 = vshrl.u32 %v917, 7
          %v919 = vsub.s32 2, %v918
          %v920 = vrot.slane %v907, %v919
          %v924 = vadd.f32 %v883, %v912
          %v925 = vadd.f32 %v884, %v916
          %v926 = vadd.f32 %v885, %v920
          %v927 = vadd.f32 %v886, %v912
          %v928 = vadd.f32 %v887, %v916
          %v929 = vadd.f32 %v888, %v920
          %v930 = vadd.f32 %v889, %v912
          %v931 = vadd.f32 %v890, %v916
          %v932 = vadd.f32 %v891, %v920
          %v933 = vadd.f32 %v892, %v912
          %v934 = vadd.f32 %v893, %v916
          %v935 = vadd.f32 %v894, %v920
          %v936 = vadd.f32 %v895, %v912
          %v937 = vadd.f32 %v896, %v916
          %v938 = vadd.f32 %v897, %v920
          %v939 = vadd.f32 %v898, %v912
          %v940 = vadd.f32 %v899, %v916
          %v941 = vadd.f32 %v900, %v920
          %v942 = vadd.f32 %v901, %v912
          %v943 = vadd.f32 %v902, %v916
          %v944 = vadd.f32 %v903, %v920
          %v945 = vadd.f32 %v904, %v912
          %v946 = vadd.f32 %v905, %v916
          %v947 = vadd.f32 %v906, %v920
          %v948 = vmax.f32 %v924, 0.0
          %v949 = vmax.f32 %v925, 0.0
          %v950 = vmax.f32 %v926, 0.0
          %v951 = vmax.f32 %v927, 0.0
          %v952 = vmax.f32 %v928, 0.0
          %v953 = vmax.f32 %v929, 0.0
          %v954 = vmax.f32 %v930, 0.0
          %v955 = vmax.f32 %v931, 0.0
          %v956 = vmax.f32 %v932, 0.0
          %v957 = vmax.f32 %v933, 0.0
          %v958 = vmax.f32 %v934, 0.0
          %v959 = vmax.f32 %v935, 0.0
          %v960 = vmax.f32 %v936, 0.0
          %v961 = vmax.f32 %v937, 0.0
          %v962 = vmax.f32 %v938, 0.0
          %v963 = vmax.f32 %v939, 0.0
          %v964 = vmax.f32 %v940, 0.0
          %v965 = vmax.f32 %v941, 0.0
          %v966 = vmax.f32 %v942, 0.0
          %v967 = vmax.f32 %v943, 0.0
          %v968 = vmax.f32 %v944, 0.0
          %v969 = vmax.f32 %v945, 0.0
          %v970 = vmax.f32 %v946, 0.0
          %v971 = vmax.f32 %v947, 0.0
          %972 = vst [vmem:[%s241] sm:$0xff] %v948
          %973 = vst [vmem:[%s241 + $0x8] sm:$0xff] %v949
          %974 = vst [vmem:[%s241 + $0x10] sm:$0xff] %v950
          %975 = vst [vmem:[%s241 + $0x18] sm:$0xff] %v951
          %976 = vst [vmem:[%s241 + $0x20] sm:$0xff] %v952
          %977 = vst [vmem:[%s241 + $0x28] sm:$0xff] %v953
          %978 = vst [vmem:[%s241 + $0x30] sm:$0xff] %v954
          %979 = vst [vmem:[%s241 + $0x38] sm:$0xff] %v955
          %980 = vst [vmem:[%s241 + $0x40] sm:$0xff] %v956
          %981 = vst [vmem:[%s241 + $0x48] sm:$0xff] %v957
          %982 = vst [vmem:[%s241 + $0x50] sm:$0xff] %v958
          %983 = vst [vmem:[%s241 + $0x58] sm:$0xff] %v959
          %984 = vst [vmem:[%s241 + $0x60] sm:$0xff] %v960
          %985 = vst [vmem:[%s241 + $0x68] sm:$0xff] %v961
          %986 = vst [vmem:[%s241 + $0x70] sm:$0xff] %v962
          %987 = vst [vmem:[%s241 + $0x78] sm:$0xff] %v963
          %988 = vst [vmem:[%s241 + $0x80] sm:$0xff] %v964
          %989 = vst [vmem:[%s241 + $0x88] sm:$0xff] %v965
          %990 = vst [vmem:[%s241 + $0x90] sm:$0xff] %v966
          %991 = vst [vmem:[%s241 + $0x98] sm:$0xff] %v967
          %992 = vst [vmem:[%s241 + $0xa0] sm:$0xff] %v968
          %993 = vst [vmem:[%s241 + $0xa8] sm:$0xff] %v969
          %994 = vst [vmem:[%s241 + $0xb0] sm:$0xff] %v970
          %995 = vst [vmem:[%s241 + $0xb8] sm:$0xff] %v971
        $region40: #{linear_relu_pallas.1} parent=31 // pred_fallthru
          _
        %s996 = sand.u32 %s128, 1
        %s997 = scalar_lea.sflag [#allocation3], %s996
        %s998 = sand.u32 %s128, 1
        %s999 = smul.addr %s998, 192
        %s1000 = scalar_lea.vmem [#allocation2], %s999
        // Predicated region
        $region41: #{linear_relu_pallas.1} parent=31 // pred_check
          %p1001 = pneg %p138
        $region42: #{linear_relu_pallas.1} parent=31 // pred_check_branch
          %1003 = sbr.rel (%p1001) target = $region44
        $region43: #{linear_relu_pallas.1} parent=31 // pred_region
          %s1004 = smul.u32 8, %s22
          %s1005 = smul.u32 3, %s23
          %s1007 = ssub.s32 3072, 3072
          %1008 = vsyncadd %s997, %s1007
          %s1009 = smul.addr %s1004, 3
          %s1010 = sadd.s32 %s1005, %s1009
          %s1011 = smul.addr %s1010, 128
          %s1012 = scalar_lea.hbm %s3, %s1011
          %s1013 = sshll.u32 %s1000, 4
          %s1014 = int_to_ptr.vmem [resolvable:$true] %s1013
          %1019 = dma.vmem_to_hbm [thread:$0]  %s1014, 3072, %s1012, %s997, 384, 384, 24
        $region44: #{linear_relu_pallas.1} parent=31 // pred_fallthru
          _
      $region32: #{linear_relu_pallas.1} parent=5 // pred_fallthru
        _
      %p1020 = scmp.le.s32.totalorder 2, %s12
      // Predicated region
      $region45: #{linear_relu_pallas.1} parent=5 // pred_check
        %p1021 = pneg %p1020
      $region46: #{linear_relu_pallas.1} parent=5 // pred_check_branch
        %1023 = sbr.rel (%p1021) target = $region48
      $region47: #{linear_relu_pallas.1} parent=5 // pred_region
        %s1024 = ssub.s32 %s12, 2
        // Predicated region
        $region49: #{linear_relu_pallas.1} parent=47 // pred_check
          %p1025 = pneg %p144
        $region50: #{linear_relu_pallas.1} parent=47 // pred_check_branch
          %1027 = sbr.rel (%p1025) target = $region52
        $region51: #{linear_relu_pallas.1} parent=47 // pred_region
          %s1028 = sand.u32 %s129, 1
          %s1029 = scalar_lea.sflag [#allocation3], %s1028
          %s1030 = sand.u32 %s129, 1
          %s1031 = smul.addr %s1030, 192
          %s1032 = scalar_lea.vmem [#allocation2], %s1031
          %1033 = dma.done %s1029, 3072
        $region52: #{linear_relu_pallas.1} parent=47 // pred_fallthru
          _
      $region48: #{linear_relu_pallas.1} parent=5 // pred_fallthru
        _
    $region6: #{linear_relu_pallas.1} parent=1 // loop_footer
      %s16 = sadd.s32 1, %s12
    $region7: #{linear_relu_pallas.1} parent=1 // loop_footer_branch
      %11 = sbr.rel target = $region3
    $region8: #{linear_relu_pallas.1} parent=1 // loop_exit
      _
    %1034 = vsyncpa [#allocation3], 1
    %s1035 = scalar_lea.sflag [#allocation3], 1
    %1036 = vsyncpa %s1035, 1

</llo_original>
